<compile_context>
chip_gen: v5e
topology: v5e:2x2
jax: 0.10.0
libtpu: 0.0.40
codegen_flags: <defaults>
</compile_context>

<pallas_src>
import functools

import jax
import jax.numpy as jnp
from jax import lax
from jax.experimental import pallas as pl
from jax.experimental.pallas import tpu as pltpu


# ----------------------------- Pallas kernel ------------------------------ #

def _afr_kernel(x_ref, w1_ref, w2_ref, bn_ref, wse1_ref, wse2_ref,
                pool_ref, bcast_ref, lane_ref, o_ref, *, img_h):
    """Fused ResidualSEBlock on a (ROWS, W*C) lane-dense slab.

    ROWS = BT*H (BT images of H rows each); lane index = w*C + c.
    """
    x = x_ref[...]                          # (ROWS, WC) f32
    rows, wc = x.shape
    mm_dtype = w1_ref.dtype

    # Per-row image-boundary masks, generated in-kernel (sublane iota on the VPU) —
    # no HBM traffic for masks.
    hh = lax.broadcasted_iota(jnp.int32, (rows, wc), 0) % img_h
    mlo = (hh != 0).astype(jnp.float32)             # 1.0 where h > 0 (within image)
    mhi = (hh != img_h - 1).astype(jnp.float32)     # 1.0 where h < H - 1

    bn = bn_ref[...]                        # (4, WC) folded conv-bias + BatchNorm
    s1, t1 = bn[0:1, :], bn[1:2, :]
    s2, t2 = bn[2:3, :], bn[3:4, :]

    def conv_bn(inp, w_ref, scale, shift):
        # (3,1) conv along H == one MXU matmul against a fused block-diagonal weight.
        xm = pltpu.roll(inp, 1, 0) * mlo             # inp[h-1], zeroed at h == 0
        xp = pltpu.roll(inp, rows - 1, 0) * mhi      # inp[h+1], zeroed at h == H-1
        xs = jnp.concatenate([xm, inp, xp], axis=-1).astype(mm_dtype)   # (ROWS, 3*WC)
        y = jnp.dot(xs, w_ref[...], preferred_element_type=jnp.float32)
        return y * scale + shift                     # folded conv bias + BN (eval)

    h1 = jnp.maximum(conv_bn(x, w1_ref, s1, t1), 0.0)        # conv1 -> bn1 -> relu
    h2 = conv_bn(h1, w2_ref, s2, t2)                         # conv2 -> bn2

    # SE: per-image global avg pool -> fc1 -> relu -> fc2 -> sigmoid -> rescale.
    # Pool / broadcast are tiny constant matmuls (exact), all on the MXU.
    pooled = jnp.dot(pool_ref[...], h2, preferred_element_type=jnp.float32)       # (BTP, WC)
    z = jnp.maximum(
        jnp.dot(pooled, wse1_ref[...], preferred_element_type=jnp.float32), 0.0)  # (BTP, CrP)
    s = jax.nn.sigmoid(
        jnp.dot(z, wse2_ref[...], preferred_element_type=jnp.float32))            # (BTP, C)
    s_wc = jnp.dot(s, lane_ref[...], preferred_element_type=jnp.float32)          # (BTP, WC)
    s_full = jnp.dot(bcast_ref[...], s_wc, preferred_element_type=jnp.float32)    # (ROWS, WC)

    # residual (identity) + relu; lane-dense unmasked store.
    o_ref[...] = jnp.maximum(h2 * s_full + x, 0.0).astype(o_ref.dtype)


# ------------------------------ JAX wrapper -------------------------------- #

def expafr_forward_pallas(x_nchw, params, *, matmul_dtype=jnp.bfloat16):
    """x_nchw: (B, C, H, W) float32 -> (B, C, H, W) float32."""
    B, C, H, W = x_nchw.shape
    WC = W * C
    Cr = params["wse1"].shape[0]            # C // reduction
    CrP = 128                               # zero-pad SE hidden dim to full lane width
    eps = 1e-5
    f32 = jnp.float32

    # --- batch-tile size: as many images per grid step as reasonable -----------
    bt = max(1, min(B, max(1, 512 // H)))
    while B % bt:
        bt -= 1
    if bt < B and (bt * H) % 8 != 0:        # keep sublane dim of partial blocks aligned
        bt = B
    rows = bt * H
    BTP = ((bt + 7) // 8) * 8               # pad image-slot dim to 8 (exact, zero rows)

    # --- fused block-diagonal conv weights: (3*W*C, W*C), taps stacked along K --
    def fused_conv_weight(w):               # torch layout (Cout, Cin, 3, 1)
        taps = jnp.transpose(w[:, :, :, 0], (2, 1, 0)).astype(f32)     # (3, Cin, Cout)
        eye_w = jnp.eye(W, dtype=f32)
        blk = jnp.einsum("wv,kio->kwivo", eye_w, taps)                 # (3, W, C, W, C)
        return blk.reshape(3 * WC, WC).astype(matmul_dtype)

    w1f = fused_conv_weight(params["w1"])
    w2f = fused_conv_weight(params["w2"])

    # --- fold conv bias + eval-mode BN into per-channel scale/shift, tiled to WC -
    def bn_fold(g, be, m, v, b):
        s = g / jnp.sqrt(v + eps)
        t = (b - m) * s + be
        return jnp.tile(s, W), jnp.tile(t, W)

    s1, t1 = bn_fold(params["g1"], params["be1"], params["m1"], params["v1"], params["b1"])
    s2, t2 = bn_fold(params["g2"], params["be2"], params["m2"], params["v2"], params["b2"])
    bn = jnp.stack([s1, t1, s2, t2]).astype(f32)                       # (4, WC)

    # --- SE weights (torch Linear stores (out, in); kernel uses y @ W.T) --------
    wse1T = jnp.zeros((C, CrP), f32).at[:, :Cr].set(jnp.transpose(params["wse1"]).astype(f32))
    wse2T = jnp.zeros((CrP, C), f32).at[:Cr, :].set(jnp.transpose(params["wse2"]).astype(f32))
    wse1_full = jnp.tile(wse1T, (W, 1))     # (WC, CrP): lane-fold (sum over W) fused into fc1

    # --- constant matrices: per-image pool / row broadcast / channel->lane expand
    eye_pad = jnp.zeros((BTP, bt), f32).at[:bt, :].set(jnp.eye(bt, dtype=f32))   # (BTP, bt)
    rep = jnp.repeat(eye_pad, H, axis=1)                                          # (BTP, rows)
    pool = rep / float(H * W)                                                     # (BTP, rows)
    bcast = rep.T                                                                 # (rows, BTP)
    lane_expand = jnp.tile(jnp.eye(C, dtype=f32), (W, 1)).T                       # (C, WC)

    # --- NCHW -> (B*H, W*C) lane-dense slab --------------------------------------
    # TODO(synk): these two transposes are layout glue; if the surrounding model ran
    # channels-last (NHWC) they would disappear entirely.
    x_slab = jnp.transpose(x_nchw, (0, 2, 3, 1)).reshape(B * H, WC).astype(f32)

    full = lambda i: (0, 0)
    kernel = functools.partial(_afr_kernel, img_h=H)
    out = pl.pallas_call(
        kernel,
        out_shape=jax.ShapeDtypeStruct((B * H, WC), f32),
        grid_spec=pltpu.PrefetchScalarGridSpec(
            num_scalar_prefetch=0,
            grid=(B // bt,),
            in_specs=[
                pl.BlockSpec((rows, WC), lambda i: (i, 0)),     # x slab (one batch tile)
                pl.BlockSpec((3 * WC, WC), full),               # fused conv1 weight
                pl.BlockSpec((3 * WC, WC), full),               # fused conv2 weight
                pl.BlockSpec((4, WC), full),                    # folded BN scale/shift
                pl.BlockSpec((WC, CrP), full),                  # SE fc1 (+ lane fold)
                pl.BlockSpec((CrP, C), full),                   # SE fc2
                pl.BlockSpec((BTP, rows), full),                # per-image avg-pool matrix
                pl.BlockSpec((rows, BTP), full),                # per-image row broadcast
                pl.BlockSpec((C, WC), full),                    # channel -> lane expand
            ],
            out_specs=pl.BlockSpec((rows, WC), lambda i: (i, 0)),
        ),
        compiler_params=pltpu.CompilerParams(
            dimension_semantics=("parallel",)),
    )(x_slab, w1f, w2f, bn, wse1_full, wse2T, pool, bcast, lane_expand)

    # TODO(synk): for large H*W, tile H with a +-1-row halo and split the SE pool into
    # an accumulate pass + apply pass (needed to stay inside v7x's 64 MiB VMEM).
    return jnp.transpose(out.reshape(B, H, W, C), (0, 3, 1, 2))


# ----------------------- pure-JAX reference (NCHW) ------------------------- #

def expafr_forward_ref(x, p):
    eps = 1e-5

    def conv(x, w, b):
        y = jax.lax.conv_general_dilated(
            x, w, window_strides=(1, 1), padding=((1, 1), (0, 0)),
            dimension_numbers=("NCHW", "OIHW", "NCHW"))
        return y + b.reshape(1, -1, 1, 1)

    def bn(x, g, be, m, v):
        return ((x - m.reshape(1, -1, 1, 1))
                / jnp.sqrt(v.reshape(1, -1, 1, 1) + eps)
                * g.reshape(1, -1, 1, 1) + be.reshape(1, -1, 1, 1))

    out = jax.nn.relu(bn(conv(x, p["w1"], p["b1"]), p["g1"], p["be1"], p["m1"], p["v1"]))
    out = bn(conv(out, p["w2"], p["b2"]), p["g2"], p["be2"], p["m2"], p["v2"])
    y = out.mean(axis=(2, 3))                               # (B, C)
    y = jax.nn.relu(y @ p["wse1"].T)
    y = jax.nn.sigmoid(y @ p["wse2"].T)
    out = out * y[:, :, None, None]
    return jax.nn.relu(out + x)


# ------------------------------- parameters -------------------------------- #

def init_params(key, C, reduction):
    Cr = C // reduction
    ks = jax.random.split(key, 12)
    kconv = 1.0 / jnp.sqrt(3.0 * C)
    klin1 = 1.0 / jnp.sqrt(float(C))
    klin2 = 1.0 / jnp.sqrt(float(Cr))
    u = lambda k, s, b: jax.random.uniform(k, s, jnp.float32, -b, b)
    return {
        "w1": u(ks[0], (C, C, 3, 1), kconv), "b1": u(ks[1], (C,), kconv),
        "g1": jax.random.uniform(ks[2], (C,), jnp.float32, 0.5, 1.5),
        "be1": u(ks[3], (C,), 0.1),
        "m1": 0.1 * jax.random.normal(ks[4], (C,), jnp.float32),
        "v1": jax.random.uniform(ks[5], (C,), jnp.float32, 0.5, 1.5),
        "w2": u(ks[6], (C, C, 3, 1), kconv), "b2": u(ks[7], (C,), kconv),
        "g2": jax.random.uniform(ks[8], (C,), jnp.float32, 0.5, 1.5),
        "be2": u(ks[9], (C,), 0.1),
        "m2": 0.1 * jax.random.normal(ks[10], (C,), jnp.float32),
        "v2": jax.random.uniform(ks[11], (C,), jnp.float32, 0.5, 1.5),
        "wse1": u(jax.random.fold_in(key, 100), (Cr, C), klin1),   # Linear(C -> C//r)
        "wse2": u(jax.random.fold_in(key, 101), (C, Cr), klin2),   # Linear(C//r -> C)
    }


# ---------------------------------- main ----------------------------------- #

if __name__ == "__main__":
    B, C, H, W = 2, 32, 16, 4          # se_reduction_base=16 requires C >= 16; W*C = 128
    REDUCTION = 16

    key = jax.random.PRNGKey(0)
    kx, kp = jax.random.split(key)
    x = jax.random.normal(kx, (B, C, H, W), jnp.float32)
    params = init_params(kp, C, REDUCTION)

    out_ref = jax.block_until_ready(expafr_forward_ref(x, params))

    # f32-matmul variant: tight structural correctness check.
    out_f32 = jax.block_until_ready(
        expafr_forward_pallas(x, params, matmul_dtype=jnp.float32))
    assert out_f32.shape == (B, C, H, W)
    err_f32 = float(jnp.max(jnp.abs(out_f32 - out_ref)))
    assert err_f32 < 1e-3, f"f32 kernel mismatch vs reference, max abs err = {err_f32}"

    # bf16-matmul variant (default optimized path for v6e/v7x MXU); looser tolerance
    # accounts for bf16 rounding of the conv matmul operands (f32 accumulation).
    out_bf16 = jax.block_until_ready(
        expafr_forward_pallas(x, params, matmul_dtype=jnp.bfloat16))
    err_bf16 = float(jnp.max(jnp.abs(out_bf16 - out_ref)))
    assert err_bf16 < 1e-1, f"bf16 kernel mismatch vs reference, max abs err = {err_bf16}"

    print("KERNEL_OK")
</pallas_src>

<mosaic_0001>
module attributes {stable_mosaic.version = 11 : i64} {
  func.func @_afr_kernel(%arg0: i32, %arg1: memref<32x128xf32, #tpu.memory_space<vmem>>, %arg2: memref<384x128xf32, #tpu.memory_space<vmem>>, %arg3: memref<384x128xf32, #tpu.memory_space<vmem>>, %arg4: memref<4x128xf32, #tpu.memory_space<vmem>>, %arg5: memref<128x128xf32, #tpu.memory_space<vmem>>, %arg6: memref<128x32xf32, #tpu.memory_space<vmem>>, %arg7: memref<8x32xf32, #tpu.memory_space<vmem>>, %arg8: memref<32x8xf32, #tpu.memory_space<vmem>>, %arg9: memref<32x128xf32, #tpu.memory_space<vmem>>, %arg10: memref<32x128xf32, #tpu.memory_space<vmem>>) attributes {dimension_semantics = [#tpu.dimension_semantics<parallel>], iteration_bounds = array<i64: 1>, scalar_prefetch = 0 : i64, scratch_operands = 0 : i64, tpu.core_type = #tpu.core_type<tc>, window_params = [{transform_indices = @transform_0, window_bounds = array<i64: 32, 128>}, {pipeline_mode = #tpu.pipeline_mode<synchronous>, transform_indices = @transform_1, window_bounds = array<i64: 384, 128>}, {pipeline_mode = #tpu.pipeline_mode<synchronous>, transform_indices = @transform_2, window_bounds = array<i64: 384, 128>}, {pipeline_mode = #tpu.pipeline_mode<synchronous>, transform_indices = @transform_3, window_bounds = array<i64: 4, 128>}, {pipeline_mode = #tpu.pipeline_mode<synchronous>, transform_indices = @transform_4, window_bounds = array<i64: 128, 128>}, {pipeline_mode = #tpu.pipeline_mode<synchronous>, transform_indices = @transform_5, window_bounds = array<i64: 128, 32>}, {pipeline_mode = #tpu.pipeline_mode<synchronous>, transform_indices = @transform_6, window_bounds = array<i64: 8, 32>}, {pipeline_mode = #tpu.pipeline_mode<synchronous>, transform_indices = @transform_7, window_bounds = array<i64: 32, 8>}, {pipeline_mode = #tpu.pipeline_mode<synchronous>, transform_indices = @transform_8, window_bounds = array<i64: 32, 128>}, {transform_indices = @transform_9, window_bounds = array<i64: 32, 128>}]} {
    %c0 = arith.constant 0 : index
    %c0_0 = arith.constant 0 : index
    %0 = vector.load %arg1[%c0, %c0_0] : memref<32x128xf32, #tpu.memory_space<vmem>>, vector<32x128xf32>
    %1 = tpu.iota {dimensions = array<i32: 0>} : vector<32x128xi32>
    %c16_i32 = arith.constant 16 : i32
    %c0_i32 = arith.constant 0 : i32
    %2 = arith.cmpi eq, %c16_i32, %c0_i32 : i32
    %c1_i32 = arith.constant 1 : i32
    %3 = arith.select %2, %c1_i32, %c16_i32 : i32
    %4 = vector.broadcast %3 : i32 to vector<32x128xi32>
    %5 = arith.remsi %1, %4 : vector<32x128xi32>
    %c0_i32_1 = arith.constant 0 : i32
    %6 = vector.broadcast %c0_i32_1 : i32 to vector<32x128xi32>
    %7 = arith.cmpi ne, %5, %6 : vector<32x128xi32>
    %c0_i32_2 = arith.constant 0 : i32
    %8 = vector.broadcast %c0_i32_2 : i32 to vector<32x128xi32>
    %9 = arith.cmpi slt, %5, %8 : vector<32x128xi32>
    %c0_i32_3 = arith.constant 0 : i32
    %10 = arith.cmpi slt, %3, %c0_i32_3 : i32
    %11 = vector.broadcast %10 : i1 to vector<32x128xi1>
    %12 = vector.broadcast %11 : vector<32x128xi1> to vector<32x128xi1>
    %13 = arith.xori %9, %12 : vector<32x128xi1>
    %14 = arith.andi %13, %7 : vector<32x128xi1>
    %15 = vector.broadcast %3 : i32 to vector<32x128xi32>
    %16 = arith.addi %5, %15 : vector<32x128xi32>
    %17 = arith.select %14, %16, %5 : vector<32x128xi1>, vector<32x128xi32>
    %c0_i32_4 = arith.constant 0 : i32
    %18 = vector.broadcast %c0_i32_4 : i32 to vector<32x128xi32>
    %19 = arith.cmpi ne, %17, %18 : vector<32x128xi32>
    %20 = arith.extui %19 : vector<32x128xi1> to vector<32x128xi32>
    %21 = arith.sitofp %20 : vector<32x128xi32> to vector<32x128xf32>
    %c15_i32 = arith.constant 15 : i32
    %22 = vector.broadcast %c15_i32 : i32 to vector<32x128xi32>
    %23 = arith.cmpi ne, %17, %22 : vector<32x128xi32>
    %24 = arith.extui %23 : vector<32x128xi1> to vector<32x128xi32>
    %25 = arith.sitofp %24 : vector<32x128xi32> to vector<32x128xf32>
    %c0_5 = arith.constant 0 : index
    %c0_6 = arith.constant 0 : index
    %26 = vector.load %arg4[%c0_5, %c0_6] : memref<4x128xf32, #tpu.memory_space<vmem>>, vector<4x128xf32>
    %27 = vector.extract_strided_slice %26 {offsets = [0, 0], sizes = [1, 128], strides = [1, 1]} : vector<4x128xf32> to vector<1x128xf32>
    %28 = vector.extract_strided_slice %26 {offsets = [1, 0], sizes = [1, 128], strides = [1, 1]} : vector<4x128xf32> to vector<1x128xf32>
    %29 = vector.extract_strided_slice %26 {offsets = [2, 0], sizes = [1, 128], strides = [1, 1]} : vector<4x128xf32> to vector<1x128xf32>
    %30 = vector.extract_strided_slice %26 {offsets = [3, 0], sizes = [1, 128], strides = [1, 1]} : vector<4x128xf32> to vector<1x128xf32>
    %c1_i32_7 = arith.constant 1 : i32
    %31 = tpu.dynamic_rotate %0 by %c1_i32_7 dim 0 : vector<32x128xf32>, i32 -> vector<32x128xf32>
    %32 = arith.mulf %31, %21 : vector<32x128xf32>
    %c31_i32 = arith.constant 31 : i32
    %33 = tpu.dynamic_rotate %0 by %c31_i32 dim 0 : vector<32x128xf32>, i32 -> vector<32x128xf32>
    %34 = arith.mulf %33, %25 : vector<32x128xf32>
    %35 = tpu.concatenate %32, %0, %34 in 1 : vector<32x128xf32>, vector<32x128xf32>, vector<32x128xf32> -> vector<32x384xf32>
    %c0_8 = arith.constant 0 : index
    %c0_9 = arith.constant 0 : index
    %36 = vector.load %arg2[%c0_8, %c0_9] : memref<384x128xf32, #tpu.memory_space<vmem>>, vector<384x128xf32>
    %cst = arith.constant dense<0.000000e+00> : vector<32x128xf32>
    %37 = tpu.matmul %35, %36, %cst {dimension_numbers = #tpu.dot_dimension_numbers<[1], [0], [0], [1], [0, 0, 1, 1], [], []>} : vector<32x384xf32>, vector<384x128xf32>, vector<32x128xf32> -> vector<32x128xf32>
    %38 = vector.broadcast %27 : vector<1x128xf32> to vector<32x128xf32>
    %39 = arith.mulf %37, %38 : vector<32x128xf32>
    %40 = vector.broadcast %28 : vector<1x128xf32> to vector<32x128xf32>
    %41 = arith.addf %39, %40 : vector<32x128xf32>
    %cst_10 = arith.constant 0.000000e+00 : f32
    %42 = vector.broadcast %cst_10 : f32 to vector<32x128xf32>
    %43 = arith.maximumf %41, %42 : vector<32x128xf32>
    %c1_i32_11 = arith.constant 1 : i32
    %44 = tpu.dynamic_rotate %43 by %c1_i32_11 dim 0 : vector<32x128xf32>, i32 -> vector<32x128xf32>
    %45 = arith.mulf %44, %21 : vector<32x128xf32>
    %c31_i32_12 = arith.constant 31 : i32
    %46 = tpu.dynamic_rotate %43 by %c31_i32_12 dim 0 : vector<32x128xf32>, i32 -> vector<32x128xf32>
    %47 = arith.mulf %46, %25 : vector<32x128xf32>
    %48 = tpu.concatenate %45, %43, %47 in 1 : vector<32x128xf32>, vector<32x128xf32>, vector<32x128xf32> -> vector<32x384xf32>
    %c0_13 = arith.constant 0 : index
    %c0_14 = arith.constant 0 : index
    %49 = vector.load %arg3[%c0_13, %c0_14] : memref<384x128xf32, #tpu.memory_space<vmem>>, vector<384x128xf32>
    %cst_15 = arith.constant dense<0.000000e+00> : vector<32x128xf32>
    %50 = tpu.matmul %48, %49, %cst_15 {dimension_numbers = #tpu.dot_dimension_numbers<[1], [0], [0], [1], [0, 0, 1, 1], [], []>} : vector<32x384xf32>, vector<384x128xf32>, vector<32x128xf32> -> vector<32x128xf32>
    %51 = vector.broadcast %29 : vector<1x128xf32> to vector<32x128xf32>
    %52 = arith.mulf %50, %51 : vector<32x128xf32>
    %53 = vector.broadcast %30 : vector<1x128xf32> to vector<32x128xf32>
    %54 = arith.addf %52, %53 : vector<32x128xf32>
    %c0_16 = arith.constant 0 : index
    %c0_17 = arith.constant 0 : index
    %55 = vector.load %arg7[%c0_16, %c0_17] : memref<8x32xf32, #tpu.memory_space<vmem>>, vector<8x32xf32>
    %cst_18 = arith.constant dense<0.000000e+00> : vector<8x128xf32>
    %56 = tpu.matmul %55, %54, %cst_18 {dimension_numbers = #tpu.dot_dimension_numbers<[1], [0], [0], [1], [0, 0, 1, 1], [], []>} : vector<8x32xf32>, vector<32x128xf32>, vector<8x128xf32> -> vector<8x128xf32>
    %c0_19 = arith.constant 0 : index
    %c0_20 = arith.constant 0 : index
    %57 = vector.load %arg5[%c0_19, %c0_20] : memref<128x128xf32, #tpu.memory_space<vmem>>, vector<128x128xf32>
    %cst_21 = arith.constant dense<0.000000e+00> : vector<8x128xf32>
    %58 = tpu.matmul %56, %57, %cst_21 {dimension_numbers = #tpu.dot_dimension_numbers<[1], [0], [0], [1], [0, 0, 1, 1], [], []>} : vector<8x128xf32>, vector<128x128xf32>, vector<8x128xf32> -> vector<8x128xf32>
    %cst_22 = arith.constant 0.000000e+00 : f32
    %59 = vector.broadcast %cst_22 : f32 to vector<8x128xf32>
    %60 = arith.maximumf %58, %59 : vector<8x128xf32>
    %c0_23 = arith.constant 0 : index
    %c0_24 = arith.constant 0 : index
    %61 = vector.load %arg6[%c0_23, %c0_24] : memref<128x32xf32, #tpu.memory_space<vmem>>, vector<128x32xf32>
    %cst_25 = arith.constant dense<0.000000e+00> : vector<8x32xf32>
    %62 = tpu.matmul %60, %61, %cst_25 {dimension_numbers = #tpu.dot_dimension_numbers<[1], [0], [0], [1], [0, 0, 1, 1], [], []>} : vector<8x128xf32>, vector<128x32xf32>, vector<8x32xf32> -> vector<8x32xf32>
    %63 = arith.negf %62 : vector<8x32xf32>
    %64 = math.exp %63 : vector<8x32xf32>
    %cst_26 = arith.constant 1.000000e+00 : f32
    %65 = vector.broadcast %cst_26 : f32 to vector<8x32xf32>
    %66 = arith.addf %65, %64 : vector<8x32xf32>
    %67 = arith.divf %65, %66 : vector<8x32xf32>
    %c0_27 = arith.constant 0 : index
    %c0_28 = arith.constant 0 : index
    %68 = vector.load %arg9[%c0_27, %c0_28] : memref<32x128xf32, #tpu.memory_space<vmem>>, vector<32x128xf32>
    %cst_29 = arith.constant dense<0.000000e+00> : vector<8x128xf32>
    %69 = tpu.matmul %67, %68, %cst_29 {dimension_numbers = #tpu.dot_dimension_numbers<[1], [0], [0], [1], [0, 0, 1, 1], [], []>} : vector<8x32xf32>, vector<32x128xf32>, vector<8x128xf32> -> vector<8x128xf32>
    %c0_30 = arith.constant 0 : index
    %c0_31 = arith.constant 0 : index
    %70 = vector.load %arg8[%c0_30, %c0_31] : memref<32x8xf32, #tpu.memory_space<vmem>>, vector<32x8xf32>
    %cst_32 = arith.constant dense<0.000000e+00> : vector<32x128xf32>
    %71 = tpu.matmul %70, %69, %cst_32 {dimension_numbers = #tpu.dot_dimension_numbers<[1], [0], [0], [1], [0, 0, 1, 1], [], []>} : vector<32x8xf32>, vector<8x128xf32>, vector<32x128xf32> -> vector<32x128xf32>
    %72 = arith.mulf %54, %71 : vector<32x128xf32>
    %73 = arith.addf %72, %0 : vector<32x128xf32>
    %cst_33 = arith.constant 0.000000e+00 : f32
    %74 = vector.broadcast %cst_33 : f32 to vector<32x128xf32>
    %75 = arith.maximumf %73, %74 : vector<32x128xf32>
    %c0_34 = arith.constant 0 : index
    %c0_35 = arith.constant 0 : index
    %76 = vector.load %arg10[%c0_34, %c0_35] : memref<32x128xf32, #tpu.memory_space<vmem>>, vector<32x128xf32>
    tpu.vector_store %arg10[%c0_34, %c0_35], %75 {strides = array<i32>} : memref<32x128xf32, #tpu.memory_space<vmem>>, vector<32x128xf32>,
    return
  }
  func.func @transform_0(%arg0: i32) -> (i32, i32) {
    %c0_i32 = arith.constant 0 : i32
    %c0_i32_0 = arith.constant 0 : i32
    return %arg0, %c0_i32 : i32, i32
  }
  func.func @transform_1(%arg0: i32) -> (i32, i32) {
    %c0_i32 = arith.constant 0 : i32
    %c0_i32_0 = arith.constant 0 : i32
    %c0_i32_1 = arith.constant 0 : i32
    return %c0_i32, %c0_i32_0 : i32, i32
  }
  func.func @transform_2(%arg0: i32) -> (i32, i32) {
    %c0_i32 = arith.constant 0 : i32
    %c0_i32_0 = arith.constant 0 : i32
    %c0_i32_1 = arith.constant 0 : i32
    return %c0_i32, %c0_i32_0 : i32, i32
  }
  func.func @transform_3(%arg0: i32) -> (i32, i32) {
    %c0_i32 = arith.constant 0 : i32
    %c0_i32_0 = arith.constant 0 : i32
    %c0_i32_1 = arith.constant 0 : i32
    return %c0_i32, %c0_i32_0 : i32, i32
  }
  func.func @transform_4(%arg0: i32) -> (i32, i32) {
    %c0_i32 = arith.constant 0 : i32
    %c0_i32_0 = arith.constant 0 : i32
    %c0_i32_1 = arith.constant 0 : i32
    return %c0_i32, %c0_i32_0 : i32, i32
  }
  func.func @transform_5(%arg0: i32) -> (i32, i32) {
    %c0_i32 = arith.constant 0 : i32
    %c0_i32_0 = arith.constant 0 : i32
    %c0_i32_1 = arith.constant 0 : i32
    return %c0_i32, %c0_i32_0 : i32, i32
  }
  func.func @transform_6(%arg0: i32) -> (i32, i32) {
    %c0_i32 = arith.constant 0 : i32
    %c0_i32_0 = arith.constant 0 : i32
    %c0_i32_1 = arith.constant 0 : i32
    return %c0_i32, %c0_i32_0 : i32, i32
  }
  func.func @transform_7(%arg0: i32) -> (i32, i32) {
    %c0_i32 = arith.constant 0 : i32
    %c0_i32_0 = arith.constant 0 : i32
    %c0_i32_1 = arith.constant 0 : i32
    return %c0_i32, %c0_i32_0 : i32, i32
  }
  func.func @transform_8(%arg0: i32) -> (i32, i32) {
    %c0_i32 = arith.constant 0 : i32
    %c0_i32_0 = arith.constant 0 : i32
    %c0_i32_1 = arith.constant 0 : i32
    return %c0_i32, %c0_i32_0 : i32, i32
  }
  func.func @transform_9(%arg0: i32) -> (i32, i32) {
    %c0_i32 = arith.constant 0 : i32
    %c0_i32_0 = arith.constant 0 : i32
    return %arg0, %c0_i32 : i32, i32
  }
}

</mosaic_0001>

<llo_original>
// kernel: tpu_custom_call.1
$region0: #{tpu_custom_call.1}
  #allocation0 [shape = 'u32[]', space=smem, size = 0x4, offset = 0x4, fixed_abs, tag = 'smem constant byte address 0x4 - core index']
  #allocation1 [shape = 'u32[72,128]{1,0:T(1,128)}', space=vmem, size = 0x9000, scoped, tag = 'internal scratch']
  %s0 = inlined_call_operand.vmem [shape: f32[32,128], index: 0, kind: input, shape index: {}]
  %s1 = inlined_call_operand.hbm [shape: f32[384,128], index: 1, kind: input, shape index: {}]
  %s2 = inlined_call_operand.hbm [shape: f32[384,128], index: 2, kind: input, shape index: {}]
  %s3 = inlined_call_operand.vmem [shape: f32[4,128], index: 3, kind: input, shape index: {}]
  %s4 = inlined_call_operand.vmem [shape: f32[128,128], index: 4, kind: input, shape index: {}]
  %s5 = inlined_call_operand.vmem [shape: f32[128,32], index: 5, kind: input, shape index: {}]
  %s6 = inlined_call_operand.vmem [shape: f32[8,32], index: 6, kind: input, shape index: {}]
  %s7 = inlined_call_operand.vmem [shape: f32[32,8], index: 7, kind: input, shape index: {}]
  %s8 = inlined_call_operand.hbm [shape: f32[32,128], index: 8, kind: input, shape index: {}]
  %s9 = inlined_call_operand.hbm [shape: f32[32,128], index: 9, kind: output, shape index: {}]
  %s10 = sld [smem:[#allocation0]]
  $region58: #{tpu_custom_call.1} parent=0
    _
  %s12 = ssub.s32 1, %s10
  %s13 = scalar_select 0, %s12, %s10
  $region1: #{tpu_custom_call.1} parent=0
    #allocation2 [shape = 'u8[196608]{0}', space=vmem, size = 0x30000, scoped, tag = 'input window, operand 1, single buffered']
    #allocation3 [shape = 's32[1]{0}', space=sflag, size = 0x4, scoped, tag = 'scoped memory for tpu_custom_call.1']
    #allocation4 [shape = 's32[1]{0}', space=sflag, size = 0x4, scoped, tag = 'scoped memory for tpu_custom_call.1']
    #allocation5 [shape = 'u8[196608]{0}', space=vmem, size = 0x30000, scoped, tag = 'input window, operand 2, single buffered']
    #allocation6 [shape = 's32[1]{0}', space=sflag, size = 0x4, scoped, tag = 'scoped memory for tpu_custom_call.1']
    #allocation7 [shape = 'u8[16384]{0}', space=vmem, size = 0x4000, scoped, tag = 'input window, operand 8, single buffered']
    #allocation8 [shape = 'u8[16384]{0}', space=vmem, size = 0x4000, scoped, tag = 'output window, operand 0, single buffered']
    %14 = vsyncpa [#allocation3], 0
    %15 = vsyncpa [#allocation6], 0
    %16 = vsyncpa [#allocation4], 0
    // Predicated region
    $region2: #{tpu_custom_call.1} parent=1 // pred_check
      _
    $region3: #{tpu_custom_call.1} parent=1 // pred_check_branch
      %18 = sbr.rel (0) target = $region5
    $region4: #{tpu_custom_call.1} parent=1 // pred_region
      _
    $region5: #{tpu_custom_call.1} parent=1 // pred_fallthru
      _
    // Predicated region
    $region6: #{tpu_custom_call.1} parent=1 // pred_check
      _
    $region7: #{tpu_custom_call.1} parent=1 // pred_check_branch
      %20 = sbr.rel (0) target = $region9
    $region8: #{tpu_custom_call.1} parent=1 // pred_region
      %22 = vsyncadd [#allocation3], 0
      %s23 = sshll.u32 %s1, 4
      %s24 = int_to_ptr.hbm [resolvable:$true] %s23
      %s25 = sshll.u32 [#allocation2], 4
      %s26 = int_to_ptr.vmem [resolvable:$true] %s25
      %31 = dma.hbm_to_vmem [thread:$0]  %s24, 6144, %s26, [#allocation3], 128, 128, 8
    $region9: #{tpu_custom_call.1} parent=1 // pred_fallthru
      _
    // Predicated region
    $region10: #{tpu_custom_call.1} parent=1 // pred_check
      _
    $region11: #{tpu_custom_call.1} parent=1 // pred_check_branch
      %33 = sbr.rel (0) target = $region13
    $region12: #{tpu_custom_call.1} parent=1 // pred_region
      %35 = vsyncadd [#allocation6], 0
      %s36 = sshll.u32 %s2, 4
      %s37 = int_to_ptr.hbm [resolvable:$true] %s36
      %s38 = sshll.u32 [#allocation5], 4
      %s39 = int_to_ptr.vmem [resolvable:$true] %s38
      %44 = dma.hbm_to_vmem [thread:$0]  %s37, 6144, %s39, [#allocation6], 128, 128, 8
    $region13: #{tpu_custom_call.1} parent=1 // pred_fallthru
      _
    // Predicated region
    $region14: #{tpu_custom_call.1} parent=1 // pred_check
      _
    $region15: #{tpu_custom_call.1} parent=1 // pred_check_branch
      %46 = sbr.rel (0) target = $region17
    $region16: #{tpu_custom_call.1} parent=1 // pred_region
      _
    $region17: #{tpu_custom_call.1} parent=1 // pred_fallthru
      _
    // Predicated region
    $region18: #{tpu_custom_call.1} parent=1 // pred_check
      _
    $region19: #{tpu_custom_call.1} parent=1 // pred_check_branch
      %48 = sbr.rel (0) target = $region21
    $region20: #{tpu_custom_call.1} parent=1 // pred_region
      _
    $region21: #{tpu_custom_call.1} parent=1 // pred_fallthru
      _
    // Predicated region
    $region22: #{tpu_custom_call.1} parent=1 // pred_check
      _
    $region23: #{tpu_custom_call.1} parent=1 // pred_check_branch
      %50 = sbr.rel (0) target = $region25
    $region24: #{tpu_custom_call.1} parent=1 // pred_region
      _
    $region25: #{tpu_custom_call.1} parent=1 // pred_fallthru
      _
    // Predicated region
    $region26: #{tpu_custom_call.1} parent=1 // pred_check
      _
    $region27: #{tpu_custom_call.1} parent=1 // pred_check_branch
      %52 = sbr.rel (0) target = $region29
    $region28: #{tpu_custom_call.1} parent=1 // pred_region
      _
    $region29: #{tpu_custom_call.1} parent=1 // pred_fallthru
      _
    // Predicated region
    $region30: #{tpu_custom_call.1} parent=1 // pred_check
      _
    $region31: #{tpu_custom_call.1} parent=1 // pred_check_branch
      %54 = sbr.rel (0) target = $region33
    $region32: #{tpu_custom_call.1} parent=1 // pred_region
      _
    $region33: #{tpu_custom_call.1} parent=1 // pred_fallthru
      _
    // Predicated region
    $region34: #{tpu_custom_call.1} parent=1 // pred_check
      _
    $region35: #{tpu_custom_call.1} parent=1 // pred_check_branch
      %56 = sbr.rel (0) target = $region37
    $region36: #{tpu_custom_call.1} parent=1 // pred_region
      %58 = vsyncadd [#allocation6], 0
      %s59 = sshll.u32 %s8, 4
      %s60 = int_to_ptr.hbm [resolvable:$true] %s59
      %s61 = sshll.u32 [#allocation7], 4
      %s62 = int_to_ptr.vmem [resolvable:$true] %s61
      %67 = dma.hbm_to_vmem [thread:$0]  %s60, 512, %s62, [#allocation6], 128, 128, 8
    $region37: #{tpu_custom_call.1} parent=1 // pred_fallthru
      _
    // Predicated region
    $region38: #{tpu_custom_call.1} parent=1 // pred_check
      _
    $region39: #{tpu_custom_call.1} parent=1 // pred_check_branch
      %69 = sbr.rel (0) target = $region41
    $region40: #{tpu_custom_call.1} parent=1 // pred_region
      %71 = dma.done [#allocation3], 6144
    $region41: #{tpu_custom_call.1} parent=1 // pred_fallthru
      _
    // Predicated region
    $region42: #{tpu_custom_call.1} parent=1 // pred_check
      _
    $region43: #{tpu_custom_call.1} parent=1 // pred_check_branch
      %73 = sbr.rel (0) target = $region45
    $region44: #{tpu_custom_call.1} parent=1 // pred_region
      %75 = dma.done [#allocation6], 6144
    $region45: #{tpu_custom_call.1} parent=1 // pred_fallthru
      _
    // Predicated region
    $region46: #{tpu_custom_call.1} parent=1 // pred_check
      _
    $region47: #{tpu_custom_call.1} parent=1 // pred_check_branch
      %77 = sbr.rel (0) target = $region49
    $region48: #{tpu_custom_call.1} parent=1 // pred_region
      %79 = dma.done [#allocation6], 512
    $region49: #{tpu_custom_call.1} parent=1 // pred_fallthru
      _
    %v80 = vld [vmem:[%s0] sm:$0xff]
    %v81 = vld [vmem:[%s0 + $0x8] sm:$0xff]
    %v82 = vld [vmem:[%s0 + $0x10] sm:$0xff]
    %v83 = vld [vmem:[%s0 + $0x18] sm:$0xff]
    %v84 = vlaneseq
    %v85 = vshrl.u32 %v84, 7
    %v86 = vadd.s32 %v85, 8
    %v87 = vadd.s32 %v85, 16
    %v88 = vadd.s32 %v85, 24
    %vm89 = vcmp.lt.s32.totalorder %v85, 0
    %v90 = vsub.s32 0, %v85
    %v91 = vsel %vm89, %v90, %v85
    %v92 = vshrl.u32 %v91, 4
    %v93 = vand.u32 %v91, 15
    %v94 = vsub.s32 0, %v93
    %v95 = vsel %vm89, %v94, %v93
    %vm96 = vcmp.lt.s32.totalorder %v86, 0
    %v97 = vsub.s32 0, %v86
    %v98 = vsel %vm96, %v97, %v86
    %v99 = vshrl.u32 %v98, 4
    %v100 = vand.u32 %v98, 15
    %v101 = vsub.s32 0, %v100
    %v102 = vsel %vm96, %v101, %v100
    %vm103 = vcmp.lt.s32.totalorder %v87, 0
    %v104 = vsub.s32 0, %v87
    %v105 = vsel %vm103, %v104, %v87
    %v106 = vshrl.u32 %v105, 4
    %v107 = vand.u32 %v105, 15
    %v108 = vsub.s32 0, %v107
    %v109 = vsel %vm103, %v108, %v107
    %vm110 = vcmp.lt.s32.totalorder %v88, 0
    %v111 = vsub.s32 0, %v88
    %v112 = vsel %vm110, %v111, %v88
    %v113 = vshrl.u32 %v112, 4
    %v114 = vand.u32 %v112, 15
    %v115 = vsub.s32 0, %v114
    %v116 = vsel %vm110, %v115, %v114
    %vm117 = vcmp.ne.s32.totalorder %v95, 0
    %vm118 = vcmp.ne.s32.totalorder %v102, 0
    %vm119 = vcmp.ne.s32.totalorder %v109, 0
    %vm120 = vcmp.ne.s32.totalorder %v116, 0
    %vm121 = vcmp.lt.s32.totalorder %v95, 0
    %vm122 = vcmp.lt.s32.totalorder %v102, 0
    %vm123 = vcmp.lt.s32.totalorder %v109, 0
    %vm124 = vcmp.lt.s32.totalorder %v116, 0
    %vm125 = vmand %vm121, %vm117
    %vm126 = vmand %vm122, %vm118
    %vm127 = vmand %vm123, %vm119
    %vm128 = vmand %vm124, %vm120
    %v129 = vadd.s32 %v95, 16
    %v130 = vadd.s32 %v102, 16
    %v131 = vadd.s32 %v109, 16
    %v132 = vadd.s32 %v116, 16
    %v133 = vsel %vm125, %v129, %v95
    %v134 = vsel %vm126, %v130, %v102
    %v135 = vsel %vm127, %v131, %v109
    %v136 = vsel %vm128, %v132, %v116
    %vm137 = vcmp.ne.s32.totalorder %v133, 0
    %vm138 = vcmp.ne.s32.totalorder %v134, 0
    %vm139 = vcmp.ne.s32.totalorder %v135, 0
    %vm140 = vcmp.ne.s32.totalorder %v136, 0
    %v141 = vsel %vm137, 1, 0
    %v142 = vsel %vm138, 1, 0
    %v143 = vsel %vm139, 1, 0
    %v144 = vsel %vm140, 1, 0
    %v145 = vcvt.s32.f32 %v141
    %v146 = vcvt.s32.f32 %v142
    %v147 = vcvt.s32.f32 %v143
    %v148 = vcvt.s32.f32 %v144
    %vm149 = vcmp.ne.s32.totalorder %v133, 15
    %vm150 = vcmp.ne.s32.totalorder %v134, 15
    %vm151 = vcmp.ne.s32.totalorder %v135, 15
    %vm152 = vcmp.ne.s32.totalorder %v136, 15
    %v153 = vsel %vm149, 1, 0
    %v154 = vsel %vm150, 1, 0
    %v155 = vsel %vm151, 1, 0
    %v156 = vsel %vm152, 1, 0
    %v157 = vcvt.s32.f32 %v153
    %v158 = vcvt.s32.f32 %v154
    %v159 = vcvt.s32.f32 %v155
    %v160 = vcvt.s32.f32 %v156
    %v161 = vld [vmem:[%s3] sm:$0xf]
    %v162 = vrot.slane %v80, 7
    %v163 = vrot.slane %v81, 7
    %v164 = vrot.slane %v82, 7
    %v165 = vrot.slane %v83, 7
    %vm166 = vcmp.lt.s32.totalorder %v85, 1
    %v167 = vsel %vm166, %v164, %v165
    %v168 = vsel %vm166, %v163, %v164
    %v169 = vsel %vm166, %v162, %v163
    %v170 = vsel %vm166, %v165, %v162
    %v171 = vmul.f32 %v170, %v145
    %v172 = vmul.f32 %v169, %v146
    %v173 = vmul.f32 %v168, %v147
    %v174 = vmul.f32 %v167, %v148
    %v175 = vrot.slane %v80, 1
    %v176 = vrot.slane %v81, 1
    %v177 = vrot.slane %v82, 1
    %v178 = vrot.slane %v83, 1
    %vm179 = vcmp.lt.s32.totalorder %v85, 7
    %v180 = vsel %vm179, %v177, %v178
    %v181 = vsel %vm179, %v176, %v177
    %v182 = vsel %vm179, %v175, %v176
    %v183 = vsel %vm179, %v178, %v175
    %v184 = vmul.f32 %v182, %v157
    %v185 = vmul.f32 %v181, %v158
    %v186 = vmul.f32 %v180, %v159
    %v187 = vmul.f32 %v183, %v160
    %v188 = vld [vmem:[#allocation2] sm:$0xff]
    %v189 = vld [vmem:[#allocation2 + $0x8] sm:$0xff]
    %v190 = vld [vmem:[#allocation2 + $0x10] sm:$0xff]
    %v191 = vld [vmem:[#allocation2 + $0x18] sm:$0xff]
    %v192 = vld [vmem:[#allocation2 + $0x20] sm:$0xff]
    %v193 = vld [vmem:[#allocation2 + $0x28] sm:$0xff]
    %v194 = vld [vmem:[#allocation2 + $0x30] sm:$0xff]
    %v195 = vld [vmem:[#allocation2 + $0x38] sm:$0xff]
    %v196 = vld [vmem:[#allocation2 + $0x40] sm:$0xff]
    %v197 = vld [vmem:[#allocation2 + $0x48] sm:$0xff]
    %v198 = vld [vmem:[#allocation2 + $0x50] sm:$0xff]
    %v199 = vld [vmem:[#allocation2 + $0x58] sm:$0xff]
    %v200 = vld [vmem:[#allocation2 + $0x60] sm:$0xff]
    %v201 = vld [vmem:[#allocation2 + $0x68] sm:$0xff]
    %v202 = vld [vmem:[#allocation2 + $0x70] sm:$0xff]
    %v203 = vld [vmem:[#allocation2 + $0x78] sm:$0xff]
    %v204 = vld [vmem:[#allocation2 + $0x80] sm:$0xff]
    %v205 = vld [vmem:[#allocation2 + $0x88] sm:$0xff]
    %v206 = vld [vmem:[#allocation2 + $0x90] sm:$0xff]
    %v207 = vld [vmem:[#allocation2 + $0x98] sm:$0xff]
    %v208 = vld [vmem:[#allocation2 + $0xa0] sm:$0xff]
    %v209 = vld [vmem:[#allocation2 + $0xa8] sm:$0xff]
    %v210 = vld [vmem:[#allocation2 + $0xb0] sm:$0xff]
    %v211 = vld [vmem:[#allocation2 + $0xb8] sm:$0xff]
    %v212 = vld [vmem:[#allocation2 + $0xc0] sm:$0xff]
    %v213 = vld [vmem:[#allocation2 + $0xc8] sm:$0xff]
    %v214 = vld [vmem:[#allocation2 + $0xd0] sm:$0xff]
    %v215 = vld [vmem:[#allocation2 + $0xd8] sm:$0xff]
    %v216 = vld [vmem:[#allocation2 + $0xe0] sm:$0xff]
    %v217 = vld [vmem:[#allocation2 + $0xe8] sm:$0xff]
    %v218 = vld [vmem:[#allocation2 + $0xf0] sm:$0xff]
    %v219 = vld [vmem:[#allocation2 + $0xf8] sm:$0xff]
    %v220 = vld [vmem:[#allocation2 + $0x100] sm:$0xff]
    %v221 = vld [vmem:[#allocation2 + $0x108] sm:$0xff]
    %v222 = vld [vmem:[#allocation2 + $0x110] sm:$0xff]
    %v223 = vld [vmem:[#allocation2 + $0x118] sm:$0xff]
    %v224 = vld [vmem:[#allocation2 + $0x120] sm:$0xff]
    %v225 = vld [vmem:[#allocation2 + $0x128] sm:$0xff]
    %v226 = vld [vmem:[#allocation2 + $0x130] sm:$0xff]
    %v227 = vld [vmem:[#allocation2 + $0x138] sm:$0xff]
    %v228 = vld [vmem:[#allocation2 + $0x140] sm:$0xff]
    %v229 = vld [vmem:[#allocation2 + $0x148] sm:$0xff]
    %v230 = vld [vmem:[#allocation2 + $0x150] sm:$0xff]
    %v231 = vld [vmem:[#allocation2 + $0x158] sm:$0xff]
    %v232 = vld [vmem:[#allocation2 + $0x160] sm:$0xff]
    %v233 = vld [vmem:[#allocation2 + $0x168] sm:$0xff]
    %v234 = vld [vmem:[#allocation2 + $0x170] sm:$0xff]
    %v235 = vld [vmem:[#allocation2 + $0x178] sm:$0xff]
    %236 = vmatpush.msra.mxu0 %v203
    %237 = vmatpush.msra.mxu0 %v202
    %238 = vmatpush.msra.mxu0 %v201
    %239 = vmatpush.msra.mxu0 %v200
    %240 = vmatpush.msra.mxu0 %v199
    %241 = vmatpush.msra.mxu0 %v198
    %242 = vmatpush.msra.mxu0 %v197
    %243 = vmatpush.msra.mxu0 %v196
    %244 = vmatpush.msra.mxu0 %v195
    %245 = vmatpush.msra.mxu0 %v194
    %246 = vmatpush.msra.mxu0 %v193
    %247 = vmatpush.msra.mxu0 %v192
    %248 = vmatpush.msra.mxu0 %v191
    %249 = vmatpush.msra.mxu0 %v190
    %250 = vmatpush.msra.mxu0 %v189
    %251 = vmatpush.msra.mxu0 %v188
    %252 = vmatmul.f32.gmra.mxu0 %v171
    %v253 = vpop.f32.mrf.mxu0
    %v254 = vadd.f32 0.0, %v253
    %255 = vmatmul.f32.gmra.mxu0 %v172
    %v256 = vpop.f32.mrf.mxu0
    %v257 = vadd.f32 0.0, %v256
    %258 = vmatmul.f32.gmra.mxu0 %v173
    %v259 = vpop.f32.mrf.mxu0
    %v260 = vadd.f32 0.0, %v259
    %261 = vmatmul.f32.gmra.mxu0 %v174
    %v262 = vpop.f32.mrf.mxu0
    %v263 = vadd.f32 0.0, %v262
    %264 = vdwg.mxu0
    %265 = vmatpush.msra.mxu0 %v219
    %266 = vmatpush.msra.mxu0 %v218
    %267 = vmatpush.msra.mxu0 %v217
    %268 = vmatpush.msra.mxu0 %v216
    %269 = vmatpush.msra.mxu0 %v215
    %270 = vmatpush.msra.mxu0 %v214
    %271 = vmatpush.msra.mxu0 %v213
    %272 = vmatpush.msra.mxu0 %v212
    %273 = vmatpush.msra.mxu0 %v211
    %274 = vmatpush.msra.mxu0 %v210
    %275 = vmatpush.msra.mxu0 %v209
    %276 = vmatpush.msra.mxu0 %v208
    %277 = vmatpush.msra.mxu0 %v207
    %278 = vmatpush.msra.mxu0 %v206
    %279 = vmatpush.msra.mxu0 %v205
    %280 = vmatpush.msra.mxu0 %v204
    %281 = vmatmul.f32.gmra.mxu0 %v80
    %v282 = vpop.f32.mrf.mxu0
    %v283 = vadd.f32 %v254, %v282
    %284 = vmatmul.f32.gmra.mxu0 %v81
    %v285 = vpop.f32.mrf.mxu0
    %v286 = vadd.f32 %v257, %v285
    %287 = vmatmul.f32.gmra.mxu0 %v82
    %v288 = vpop.f32.mrf.mxu0
    %v289 = vadd.f32 %v260, %v288
    %290 = vmatmul.f32.gmra.mxu0 %v83
    %v291 = vpop.f32.mrf.mxu0
    %v292 = vadd.f32 %v263, %v291
    %293 = vdwg.mxu0
    %294 = vmatpush.msra.mxu0 %v235
    %295 = vmatpush.msra.mxu0 %v234
    %296 = vmatpush.msra.mxu0 %v233
    %297 = vmatpush.msra.mxu0 %v232
    %298 = vmatpush.msra.mxu0 %v231
    %299 = vmatpush.msra.mxu0 %v230
    %300 = vmatpush.msra.mxu0 %v229
    %301 = vmatpush.msra.mxu0 %v228
    %302 = vmatpush.msra.mxu0 %v227
    %303 = vmatpush.msra.mxu0 %v226
    %304 = vmatpush.msra.mxu0 %v225
    %305 = vmatpush.msra.mxu0 %v224
    %306 = vmatpush.msra.mxu0 %v223
    %307 = vmatpush.msra.mxu0 %v222
    %308 = vmatpush.msra.mxu0 %v221
    %309 = vmatpush.msra.mxu0 %v220
    %310 = vmatmul.f32.gmra.mxu0 %v184
    %v311 = vpop.f32.mrf.mxu0
    %v312 = vadd.f32 %v283, %v311
    %313 = vmatmul.f32.gmra.mxu0 %v185
    %v314 = vpop.f32.mrf.mxu0
    %v315 = vadd.f32 %v286, %v314
    %316 = vmatmul.f32.gmra.mxu0 %v186
    %v317 = vpop.f32.mrf.mxu0
    %v318 = vadd.f32 %v289, %v317
    %319 = vmatmul.f32.gmra.mxu0 %v187
    %v320 = vpop.f32.mrf.mxu0
    %v321 = vadd.f32 %v292, %v320
    %322 = vdwg.mxu0
    %v323 = vperm.slane %v161, 0
    %v324 = vmul.f32 %v312, %v323
    %v325 = vmul.f32 %v315, %v323
    %v326 = vmul.f32 %v318, %v323
    %v327 = vmul.f32 %v321, %v323
    %v328 = vperm.slane %v161, 1
    %v329 = vadd.f32 %v324, %v328
    %v330 = vadd.f32 %v325, %v328
    %v331 = vadd.f32 %v326, %v328
    %v332 = vadd.f32 %v327, %v328
    %v333 = vmax.f32 %v329, 0.0
    %v334 = vmax.f32 %v330, 0.0
    %v335 = vmax.f32 %v331, 0.0
    %v336 = vmax.f32 %v332, 0.0
    %v337 = vrot.slane %v333, 7
    %v338 = vrot.slane %v334, 7
    %v339 = vrot.slane %v335, 7
    %v340 = vrot.slane %v336, 7
    %v341 = vsel %vm166, %v339, %v340
    %v342 = vsel %vm166, %v338, %v339
    %v343 = vsel %vm166, %v337, %v338
    %v344 = vsel %vm166, %v340, %v337
    %v345 = vmul.f32 %v344, %v145
    %v346 = vmul.f32 %v343, %v146
    %v347 = vmul.f32 %v342, %v147
    %v348 = vmul.f32 %v341, %v148
    %v349 = vrot.slane %v333, 1
    %v350 = vrot.slane %v334, 1
    %v351 = vrot.slane %v335, 1
    %v352 = vrot.slane %v336, 1
    %v353 = vsel %vm179, %v351, %v352
    %v354 = vsel %vm179, %v350, %v351
    %v355 = vsel %vm179, %v349, %v350
    %v356 = vsel %vm179, %v352, %v349
    %v357 = vmul.f32 %v355, %v157
    %v358 = vmul.f32 %v354, %v158
    %v359 = vmul.f32 %v353, %v159
    %v360 = vmul.f32 %v356, %v160
    %v361 = vld [vmem:[#allocation5] sm:$0xff]
    %v362 = vld [vmem:[#allocation5 + $0x8] sm:$0xff]
    %v363 = vld [vmem:[#allocation5 + $0x10] sm:$0xff]
    %v364 = vld [vmem:[#allocation5 + $0x18] sm:$0xff]
    %v365 = vld [vmem:[#allocation5 + $0x20] sm:$0xff]
    %v366 = vld [vmem:[#allocation5 + $0x28] sm:$0xff]
    %v367 = vld [vmem:[#allocation5 + $0x30] sm:$0xff]
    %v368 = vld [vmem:[#allocation5 + $0x38] sm:$0xff]
    %v369 = vld [vmem:[#allocation5 + $0x40] sm:$0xff]
    %v370 = vld [vmem:[#allocation5 + $0x48] sm:$0xff]
    %v371 = vld [vmem:[#allocation5 + $0x50] sm:$0xff]
    %v372 = vld [vmem:[#allocation5 + $0x58] sm:$0xff]
    %v373 = vld [vmem:[#allocation5 + $0x60] sm:$0xff]
    %v374 = vld [vmem:[#allocation5 + $0x68] sm:$0xff]
    %v375 = vld [vmem:[#allocation5 + $0x70] sm:$0xff]
    %v376 = vld [vmem:[#allocation5 + $0x78] sm:$0xff]
    %v377 = vld [vmem:[#allocation5 + $0x80] sm:$0xff]
    %v378 = vld [vmem:[#allocation5 + $0x88] sm:$0xff]
    %v379 = vld [vmem:[#allocation5 + $0x90] sm:$0xff]
    %v380 = vld [vmem:[#allocation5 + $0x98] sm:$0xff]
    %v381 = vld [vmem:[#allocation5 + $0xa0] sm:$0xff]
    %v382 = vld [vmem:[#allocation5 + $0xa8] sm:$0xff]
    %v383 = vld [vmem:[#allocation5 + $0xb0] sm:$0xff]
    %v384 = vld [vmem:[#allocation5 + $0xb8] sm:$0xff]
    %v385 = vld [vmem:[#allocation5 + $0xc0] sm:$0xff]
    %v386 = vld [vmem:[#allocation5 + $0xc8] sm:$0xff]
    %v387 = vld [vmem:[#allocation5 + $0xd0] sm:$0xff]
    %v388 = vld [vmem:[#allocation5 + $0xd8] sm:$0xff]
    %v389 = vld [vmem:[#allocation5 + $0xe0] sm:$0xff]
    %v390 = vld [vmem:[#allocation5 + $0xe8] sm:$0xff]
    %v391 = vld [vmem:[#allocation5 + $0xf0] sm:$0xff]
    %v392 = vld [vmem:[#allocation5 + $0xf8] sm:$0xff]
    %v393 = vld [vmem:[#allocation5 + $0x100] sm:$0xff]
    %v394 = vld [vmem:[#allocation5 + $0x108] sm:$0xff]
    %v395 = vld [vmem:[#allocation5 + $0x110] sm:$0xff]
    %v396 = vld [vmem:[#allocation5 + $0x118] sm:$0xff]
    %v397 = vld [vmem:[#allocation5 + $0x120] sm:$0xff]
    %v398 = vld [vmem:[#allocation5 + $0x128] sm:$0xff]
    %v399 = vld [vmem:[#allocation5 + $0x130] sm:$0xff]
    %v400 = vld [vmem:[#allocation5 + $0x138] sm:$0xff]
    %v401 = vld [vmem:[#allocation5 + $0x140] sm:$0xff]
    %v402 = vld [vmem:[#allocation5 + $0x148] sm:$0xff]
    %v403 = vld [vmem:[#allocation5 + $0x150] sm:$0xff]
    %v404 = vld [vmem:[#allocation5 + $0x158] sm:$0xff]
    %v405 = vld [vmem:[#allocation5 + $0x160] sm:$0xff]
    %v406 = vld [vmem:[#allocation5 + $0x168] sm:$0xff]
    %v407 = vld [vmem:[#allocation5 + $0x170] sm:$0xff]
    %v408 = vld [vmem:[#allocation5 + $0x178] sm:$0xff]
    %409 = vmatpush.msra.mxu0 %v376
    %410 = vmatpush.msra.mxu0 %v375
    %411 = vmatpush.msra.mxu0 %v374
    %412 = vmatpush.msra.mxu0 %v373
    %413 = vmatpush.msra.mxu0 %v372
    %414 = vmatpush.msra.mxu0 %v371
    %415 = vmatpush.msra.mxu0 %v370
    %416 = vmatpush.msra.mxu0 %v369
    %417 = vmatpush.msra.mxu0 %v368
    %418 = vmatpush.msra.mxu0 %v367
    %419 = vmatpush.msra.mxu0 %v366
    %420 = vmatpush.msra.mxu0 %v365
    %421 = vmatpush.msra.mxu0 %v364
    %422 = vmatpush.msra.mxu0 %v363
    %423 = vmatpush.msra.mxu0 %v362
    %424 = vmatpush.msra.mxu0 %v361
    %425 = vmatmul.f32.gmra.mxu0 %v345
    %v426 = vpop.f32.mrf.mxu0
    %v427 = vadd.f32 0.0, %v426
    %428 = vmatmul.f32.gmra.mxu0 %v346
    %v429 = vpop.f32.mrf.mxu0
    %v430 = vadd.f32 0.0, %v429
    %431 = vmatmul.f32.gmra.mxu0 %v347
    %v432 = vpop.f32.mrf.mxu0
    %v433 = vadd.f32 0.0, %v432
    %434 = vmatmul.f32.gmra.mxu0 %v348
    %v435 = vpop.f32.mrf.mxu0
    %v436 = vadd.f32 0.0, %v435
    %437 = vdwg.mxu0
    %438 = vmatpush.msra.mxu0 %v392
    %439 = vmatpush.msra.mxu0 %v391
    %440 = vmatpush.msra.mxu0 %v390
    %441 = vmatpush.msra.mxu0 %v389
    %442 = vmatpush.msra.mxu0 %v388
    %443 = vmatpush.msra.mxu0 %v387
    %444 = vmatpush.msra.mxu0 %v386
    %445 = vmatpush.msra.mxu0 %v385
    %446 = vmatpush.msra.mxu0 %v384
    %447 = vmatpush.msra.mxu0 %v383
    %448 = vmatpush.msra.mxu0 %v382
    %449 = vmatpush.msra.mxu0 %v381
    %450 = vmatpush.msra.mxu0 %v380
    %451 = vmatpush.msra.mxu0 %v379
    %452 = vmatpush.msra.mxu0 %v378
    %453 = vmatpush.msra.mxu0 %v377
    %454 = vmatmul.f32.gmra.mxu0 %v333
    %v455 = vpop.f32.mrf.mxu0
    %v456 = vadd.f32 %v427, %v455
    %457 = vmatmul.f32.gmra.mxu0 %v334
    %v458 = vpop.f32.mrf.mxu0
    %v459 = vadd.f32 %v430, %v458
    %460 = vmatmul.f32.gmra.mxu0 %v335
    %v461 = vpop.f32.mrf.mxu0
    %v462 = vadd.f32 %v433, %v461
    %463 = vmatmul.f32.gmra.mxu0 %v336
    %v464 = vpop.f32.mrf.mxu0
    %v465 = vadd.f32 %v436, %v464
    %466 = vdwg.mxu0
    %467 = vmatpush.msra.mxu0 %v408
    %468 = vmatpush.msra.mxu0 %v407
    %469 = vmatpush.msra.mxu0 %v406
    %470 = vmatpush.msra.mxu0 %v405
    %471 = vmatpush.msra.mxu0 %v404
    %472 = vmatpush.msra.mxu0 %v403
    %473 = vmatpush.msra.mxu0 %v402
    %474 = vmatpush.msra.mxu0 %v401
    %475 = vmatpush.msra.mxu0 %v400
    %476 = vmatpush.msra.mxu0 %v399
    %477 = vmatpush.msra.mxu0 %v398
    %478 = vmatpush.msra.mxu0 %v397
    %479 = vmatpush.msra.mxu0 %v396
    %480 = vmatpush.msra.mxu0 %v395
    %481 = vmatpush.msra.mxu0 %v394
    %482 = vmatpush.msra.mxu0 %v393
    %483 = vmatmul.f32.gmra.mxu0 %v357
    %v484 = vpop.f32.mrf.mxu0
    %v485 = vadd.f32 %v456, %v484
    %486 = vmatmul.f32.gmra.mxu0 %v358
    %v487 = vpop.f32.mrf.mxu0
    %v488 = vadd.f32 %v459, %v487
    %489 = vmatmul.f32.gmra.mxu0 %v359
    %v490 = vpop.f32.mrf.mxu0
    %v491 = vadd.f32 %v462, %v490
    %492 = vmatmul.f32.gmra.mxu0 %v360
    %v493 = vpop.f32.mrf.mxu0
    %v494 = vadd.f32 %v465, %v493
    %495 = vdwg.mxu0
    %v496 = vperm.slane %v161, 2
    %v497 = vmul.f32 %v485, %v496
    %v498 = vmul.f32 %v488, %v496
    %v499 = vmul.f32 %v491, %v496
    %v500 = vmul.f32 %v494, %v496
    %v501 = vperm.slane %v161, 3
    %v502 = vadd.f32 %v497, %v501
    %v503 = vadd.f32 %v498, %v501
    %v504 = vadd.f32 %v499, %v501
    %v505 = vadd.f32 %v500, %v501
    %v506 = vld [vmem:[%s6] sm:$0xff]
    %vm507 = vcmask 261120
    %v509 = vsel %vm507, %v506, 0
    %511 = vmatpush.msra.mxu0 0.0
    %512 = vmatpush.msra.mxu0 0.0
    %513 = vmatpush.msra.mxu0 0.0
    %514 = vmatpush.msra.mxu0 0.0
    %515 = vmatpush.msra.mxu0 0.0
    %516 = vmatpush.msra.mxu0 0.0
    %517 = vmatpush.msra.mxu0 0.0
    %518 = vmatpush.msra.mxu0 0.0
    %519 = vmatpush.msra.mxu0 0.0
    %520 = vmatpush.msra.mxu0 0.0
    %521 = vmatpush.msra.mxu0 0.0
    %522 = vmatpush.msra.mxu0 0.0
    %523 = vmatpush.msra.mxu0 %v505
    %524 = vmatpush.msra.mxu0 %v504
    %525 = vmatpush.msra.mxu0 %v503
    %526 = vmatpush.msra.mxu0 %v502
    %527 = vmatmul.f32.gmra.mxu0 %v509
    %v528 = vpop.f32.mrf.mxu0
    %v529 = vadd.f32 0.0, %v528
    %530 = vdwg.mxu0
    %v531 = vld [vmem:[%s4] sm:$0xff]
    %v532 = vld [vmem:[%s4 + $0x8] sm:$0xff]
    %v533 = vld [vmem:[%s4 + $0x10] sm:$0xff]
    %v534 = vld [vmem:[%s4 + $0x18] sm:$0xff]
    %v535 = vld [vmem:[%s4 + $0x20] sm:$0xff]
    %v536 = vld [vmem:[%s4 + $0x28] sm:$0xff]
    %v537 = vld [vmem:[%s4 + $0x30] sm:$0xff]
    %v538 = vld [vmem:[%s4 + $0x38] sm:$0xff]
    %v539 = vld [vmem:[%s4 + $0x40] sm:$0xff]
    %v540 = vld [vmem:[%s4 + $0x48] sm:$0xff]
    %v541 = vld [vmem:[%s4 + $0x50] sm:$0xff]
    %v542 = vld [vmem:[%s4 + $0x58] sm:$0xff]
    %v543 = vld [vmem:[%s4 + $0x60] sm:$0xff]
    %v544 = vld [vmem:[%s4 + $0x68] sm:$0xff]
    %v545 = vld [vmem:[%s4 + $0x70] sm:$0xff]
    %v546 = vld [vmem:[%s4 + $0x78] sm:$0xff]
    %547 = vmatpush.msra.mxu0 %v546
    %548 = vmatpush.msra.mxu0 %v545
    %549 = vmatpush.msra.mxu0 %v544
    %550 = vmatpush.msra.mxu0 %v543
    %551 = vmatpush.msra.mxu0 %v542
    %552 = vmatpush.msra.mxu0 %v541
    %553 = vmatpush.msra.mxu0 %v540
    %554 = vmatpush.msra.mxu0 %v539
    %555 = vmatpush.msra.mxu0 %v538
    %556 = vmatpush.msra.mxu0 %v537
    %557 = vmatpush.msra.mxu0 %v536
    %558 = vmatpush.msra.mxu0 %v535
    %559 = vmatpush.msra.mxu0 %v534
    %560 = vmatpush.msra.mxu0 %v533
    %561 = vmatpush.msra.mxu0 %v532
    %562 = vmatpush.msra.mxu0 %v531
    %563 = vmatmul.f32.gmra.mxu0 %v529
    %v564 = vpop.f32.mrf.mxu0
    %v565 = vadd.f32 0.0, %v564
    %566 = vdwg.mxu0
    %v567 = vmax.f32 %v565, 0.0
    %v568 = vld [vmem:[%s5] sm:$0xff]
    %v569 = vld [vmem:[%s5 + $0x8] sm:$0xff]
    %v570 = vld [vmem:[%s5 + $0x10] sm:$0xff]
    %v571 = vld [vmem:[%s5 + $0x18] sm:$0xff]
    %v572 = vld [vmem:[%s5 + $0x20] sm:$0xff]
    %v573 = vld [vmem:[%s5 + $0x28] sm:$0xff]
    %v574 = vld [vmem:[%s5 + $0x30] sm:$0xff]
    %v575 = vld [vmem:[%s5 + $0x38] sm:$0xff]
    %v576 = vld [vmem:[%s5 + $0x40] sm:$0xff]
    %v577 = vld [vmem:[%s5 + $0x48] sm:$0xff]
    %v578 = vld [vmem:[%s5 + $0x50] sm:$0xff]
    %v579 = vld [vmem:[%s5 + $0x58] sm:$0xff]
    %v580 = vld [vmem:[%s5 + $0x60] sm:$0xff]
    %v581 = vld [vmem:[%s5 + $0x68] sm:$0xff]
    %v582 = vld [vmem:[%s5 + $0x70] sm:$0xff]
    %v583 = vld [vmem:[%s5 + $0x78] sm:$0xff]
    %584 = vmatpush.msra.mxu0 %v583
    %585 = vmatpush.msra.mxu0 %v582
    %586 = vmatpush.msra.mxu0 %v581
    %587 = vmatpush.msra.mxu0 %v580
    %588 = vmatpush.msra.mxu0 %v579
    %589 = vmatpush.msra.mxu0 %v578
    %590 = vmatpush.msra.mxu0 %v577
    %591 = vmatpush.msra.mxu0 %v576
    %592 = vmatpush.msra.mxu0 %v575
    %593 = vmatpush.msra.mxu0 %v574
    %594 = vmatpush.msra.mxu0 %v573
    %595 = vmatpush.msra.mxu0 %v572
    %596 = vmatpush.msra.mxu0 %v571
    %597 = vmatpush.msra.mxu0 %v570
    %598 = vmatpush.msra.mxu0 %v569
    %599 = vmatpush.msra.mxu0 %v568
    %600 = vmatmul.f32.gmra.mxu0 %v567
    %v601 = vpop.f32.mrf.mxu0
    %v602 = vadd.f32 0.0, %v601
    %603 = vdwg.mxu0
    %v604 = vxor.u32 %v602, 2147483648
    %v605 = vmul.f32 %v604, 1.442695
    %v606 = vpow.pop %v605
    %v607 = vadd.f32 %v606, 1.0
    %v608 = vrcp.pop %v607
    %v609 = vmul.f32 %v607, %v608
    %v610 = vsub.f32 1.0, %v609
    %v611 = vmul.f32 %v608, %v610
    %v612 = vadd.f32 %v608, %v611
    %vm613 = vweird.f32 %v607
    %vm614 = vweird.f32 %v608
    %vm615 = vmor %vm613, %vm614
    %v616 = vsel %vm615, %v608, %v612
    %v617 = vand.u32 2147483647, %v607
    %vm618 = vcmp.eq.f32.partialorder %v617, 8.507059e+37
    %v619 = vand.u32 %v607, 2147483648
    %v620 = vor.u32 1.1754944e-38, %v619
    %v621 = vsel %vm618, %v620, %v616
    %v622 = vmul.f32 1.0, %v621
    %v623 = vld [vmem:[#allocation7] sm:$0xff]
    %v624 = vld [vmem:[#allocation7 + $0x8] sm:$0xff]
    %v625 = vld [vmem:[#allocation7 + $0x10] sm:$0xff]
    %v626 = vld [vmem:[#allocation7 + $0x18] sm:$0xff]
    %v628 = vsel %vm507, %v622, 0
    %630 = vmatpush.msra.mxu0 0.0
    %631 = vmatpush.msra.mxu0 0.0
    %632 = vmatpush.msra.mxu0 0.0
    %633 = vmatpush.msra.mxu0 0.0
    %634 = vmatpush.msra.mxu0 0.0
    %635 = vmatpush.msra.mxu0 0.0
    %636 = vmatpush.msra.mxu0 0.0
    %637 = vmatpush.msra.mxu0 0.0
    %638 = vmatpush.msra.mxu0 0.0
    %639 = vmatpush.msra.mxu0 0.0
    %640 = vmatpush.msra.mxu0 0.0
    %641 = vmatpush.msra.mxu0 0.0
    %642 = vmatpush.msra.mxu0 %v626
    %643 = vmatpush.msra.mxu0 %v625
    %644 = vmatpush.msra.mxu0 %v624
    %645 = vmatpush.msra.mxu0 %v623
    %646 = vmatmul.f32.gmra.mxu0 %v628
    %v647 = vpop.f32.mrf.mxu0
    %v648 = vadd.f32 0.0, %v647
    %649 = vdwg.mxu0
    %v650 = vld [vmem:[%s7] sm:$0xff]
    %v651 = vld [vmem:[%s7 + $0x8] sm:$0xff]
    %v652 = vld [vmem:[%s7 + $0x10] sm:$0xff]
    %v653 = vld [vmem:[%s7 + $0x18] sm:$0xff]
    %vm654 = vcmask 64512
    %v656 = vsel %vm654, %v650, 0
    %v659 = vsel %vm654, %v651, 0
    %v662 = vsel %vm654, %v652, 0
    %v665 = vsel %vm654, %v653, 0
    %667 = vmatpush.msra.mxu0 0.0
    %668 = vmatpush.msra.mxu0 0.0
    %669 = vmatpush.msra.mxu0 0.0
    %670 = vmatpush.msra.mxu0 0.0
    %671 = vmatpush.msra.mxu0 0.0
    %672 = vmatpush.msra.mxu0 0.0
    %673 = vmatpush.msra.mxu0 0.0
    %674 = vmatpush.msra.mxu0 0.0
    %675 = vmatpush.msra.mxu0 0.0
    %676 = vmatpush.msra.mxu0 0.0
    %677 = vmatpush.msra.mxu0 0.0
    %678 = vmatpush.msra.mxu0 0.0
    %679 = vmatpush.msra.mxu0 0.0
    %680 = vmatpush.msra.mxu0 0.0
    %681 = vmatpush.msra.mxu0 0.0
    %682 = vmatpush.msra.mxu0 %v648
    %683 = vmatmul.f32.gmra.mxu0 %v656
    %v684 = vpop.f32.mrf.mxu0
    %v685 = vadd.f32 0.0, %v684
    %686 = vmatmul.f32.gmra.mxu0 %v659
    %v687 = vpop.f32.mrf.mxu0
    %v688 = vadd.f32 0.0, %v687
    %689 = vmatmul.f32.gmra.mxu0 %v662
    %v690 = vpop.f32.mrf.mxu0
    %v691 = vadd.f32 0.0, %v690
    %692 = vmatmul.f32.gmra.mxu0 %v665
    %v693 = vpop.f32.mrf.mxu0
    %v694 = vadd.f32 0.0, %v693
    %695 = vdwg.mxu0
    %v696 = vmul.f32 %v502, %v685
    %v697 = vmul.f32 %v503, %v688
    %v698 = vmul.f32 %v504, %v691
    %v699 = vmul.f32 %v505, %v694
    %v700 = vadd.f32 %v696, %v80
    %v701 = vadd.f32 %v697, %v81
    %v702 = vadd.f32 %v698, %v82
    %v703 = vadd.f32 %v699, %v83
    %v704 = vmax.f32 %v700, 0.0
    %v705 = vmax.f32 %v701, 0.0
    %v706 = vmax.f32 %v702, 0.0
    %v707 = vmax.f32 %v703, 0.0
    %708 = vst [vmem:[#allocation8] sm:$0xff] %v704
    %709 = vst [vmem:[#allocation8 + $0x8] sm:$0xff] %v705
    %710 = vst [vmem:[#allocation8 + $0x10] sm:$0xff] %v706
    %711 = vst [vmem:[#allocation8 + $0x18] sm:$0xff] %v707
    // Predicated region
    $region50: #{tpu_custom_call.1} parent=1 // pred_check
      _
    $region51: #{tpu_custom_call.1} parent=1 // pred_check_branch
      %713 = sbr.rel (0) target = $region53
    $region52: #{tpu_custom_call.1} parent=1 // pred_region
      %715 = vsyncadd [#allocation4], 0
      %s716 = sshll.u32 [#allocation8], 4
      %s717 = int_to_ptr.vmem [resolvable:$true] %s716
      %s718 = sshll.u32 %s9, 4
      %s719 = int_to_ptr.hbm [resolvable:$true] %s718
      %724 = dma.vmem_to_hbm [thread:$0]  %s717, 512, %s719, [#allocation4], 128, 128, 8
    $region53: #{tpu_custom_call.1} parent=1 // pred_fallthru
      _
    // Predicated region
    $region54: #{tpu_custom_call.1} parent=1 // pred_check
      _
    $region55: #{tpu_custom_call.1} parent=1 // pred_check_branch
      %726 = sbr.rel (0) target = $region57
    $region56: #{tpu_custom_call.1} parent=1 // pred_region
      %728 = dma.done [#allocation4], 512
    $region57: #{tpu_custom_call.1} parent=1 // pred_fallthru
      _
    %729 = vsyncpa [#allocation3], 1
    %730 = vsyncpa [#allocation6], 1
    %731 = vsyncpa [#allocation4], 1

</llo_original>
